<compile_context>
chip_gen: v6e
topology: v6e:2x2x1
jax: 0.10.0
libtpu: 0.0.40
codegen_flags: <defaults>
</compile_context>

<pallas_src>
import functools

import jax
import jax.numpy as jnp
from jax.experimental import pallas as pl
from jax.experimental.pallas import tpu as pltpu


def _round_up(x, m):
    return ((x + m - 1) // m) * m


def _margin_loss_kernel(b_ref, yp_ref, lbl_ref, out_ref, acc_ref, *,
                        gamma, lambda_, batch, tile_b):
    # b_ref:   (1, 1) f32 in SMEM       -- learnable scalar B (init 0.5)
    # yp_ref:  (C, TILE_B) in VMEM      -- y_pred transposed, batch on lanes
    # lbl_ref: (1, TILE_B) i32 in VMEM  -- class labels (padded cols = -1)
    # out_ref: (1, 1) f32 in SMEM       -- scalar loss
    # acc_ref: (C, TILE_B) f32 VMEM scratch -- running per-lane partial losses
    i = pl.program_id(0)

    @pl.when(i == 0)
    def _():
        acc_ref[...] = jnp.zeros_like(acc_ref)

    # Hoisted scalar thresholds.
    b = b_ref[0, 0]
    pos_thr = b + gamma          # B + gamma
    neg_thr = b - gamma          # B - gamma

    y = yp_ref[...].astype(jnp.float32)        # (C, TILE_B)
    labels = lbl_ref[...]                      # (1, TILE_B) i32

    # One-hot select via iota-compare on the class (sublane) axis.
    cls_ids = jax.lax.broadcasted_iota(jnp.int32, y.shape, 0)
    match = cls_ids == labels                  # (C, TILE_B) bool

    # Validity mask for batch-padding columns.
    col = jax.lax.broadcasted_iota(jnp.int32, y.shape, 1) + i * tile_b
    valid = col < batch

    pos = jnp.maximum(pos_thr - y, 0.0)
    neg = jnp.maximum(y - neg_thr, 0.0)
    loss = jnp.where(match, pos * pos, lambda_ * (neg * neg))
    loss = jnp.where(valid, loss, 0.0)

    acc_ref[...] += loss

    @pl.when(i == pl.num_programs(0) - 1)
    def _():
        # Single deferred cross-lane reduce + mean over batch.
        out_ref[0, 0] = jnp.sum(acc_ref[...]) / jnp.float32(batch)


def margin_loss(y_pred, y_true, b_param, *, gamma=0.4, lambda_=0.5,
                max_tile_b=4096):
    """y_pred: (batch, C) float; y_true: (batch,) int; b_param: scalar f32."""
    batch, num_classes = y_pred.shape

    # Batch tile on the lane axis: multiple of 128, as large as reasonable
    # (amortizes ~0.35us/step overhead; well under scoped VMEM even on v7x).
    tile_b = min(max_tile_b, _round_up(batch, 128))
    padded = _round_up(batch, tile_b)
    num_tiles = padded // tile_b

    # Lane-dense layout: batch on the 128-lane axis. (In a real model the
    # producer would emit this layout directly.)
    yp_t = jnp.transpose(y_pred)                                  # (C, batch)
    yp_t = jnp.pad(yp_t, ((0, 0), (0, padded - batch)))
    labels = jnp.pad(y_true.astype(jnp.int32).reshape(1, batch),
                     ((0, 0), (0, padded - batch)), constant_values=-1)
    b_2d = jnp.asarray(b_param, jnp.float32).reshape(1, 1)

    kernel = functools.partial(
        _margin_loss_kernel, gamma=float(gamma), lambda_=float(lambda_),
        batch=batch, tile_b=tile_b)

    itemsize = jnp.dtype(y_pred.dtype).itemsize
    cost = pl.CostEstimate(
        flops=8 * batch * num_classes,
        transcendentals=0,
        bytes_accessed=batch * num_classes * itemsize + batch * 4 + 4,
    )

    # TODO(synk): on v7x, shard the batch-tile axis across the 2 TensorCores
    # (leading "parallel" grid axis with per-core partial sums combined in the
    # wrapper) for ~2x effective HBM bandwidth on this mem-bound scan.
    out = pl.pallas_call(
        kernel,
        out_shape=jax.ShapeDtypeStruct((1, 1), jnp.float32),
        grid=(num_tiles,),
        in_specs=[
            pl.BlockSpec(memory_space=pltpu.SMEM),                    # B scalar
            pl.BlockSpec((num_classes, tile_b), lambda i: (0, i)),    # y_pred^T
            pl.BlockSpec((1, tile_b), lambda i: (0, i)),              # labels
        ],
        out_specs=pl.BlockSpec(memory_space=pltpu.SMEM),
        scratch_shapes=[pltpu.VMEM((num_classes, tile_b), jnp.float32)],
        compiler_params=pltpu.CompilerParams(
            dimension_semantics=("arbitrary",)),
        cost_estimate=cost,
    )(b_2d, yp_t, labels)
    return out[0, 0]


def margin_loss_ref(y_pred, y_true, b_param, *, gamma=0.4, lambda_=0.5):
    t = jax.nn.one_hot(y_true, y_pred.shape[1], dtype=jnp.float32)
    pos = jnp.maximum(b_param + gamma - y_pred, 0.0) ** 2
    neg = jnp.maximum(y_pred - (b_param - gamma), 0.0) ** 2
    losses = t * pos + lambda_ * (1.0 - t) * neg
    return losses.sum(axis=1).mean()


if __name__ == "__main__":
    key = jax.random.PRNGKey(0)
    k1, k2 = jax.random.split(key)

    batch, num_classes = 8, 10
    # Capsule lengths are in [0, 1); use sigmoid of random values.
    y_pred = jax.nn.sigmoid(jax.random.normal(k1, (batch, num_classes), jnp.float32))
    y_true = jax.random.randint(k2, (batch,), 0, num_classes, jnp.int32)

    # Deterministic parameter init (matches nn.Parameter(torch.Tensor([0.5]))).
    B_param = jnp.float32(0.5)

    loss = margin_loss(y_pred, y_true, B_param)
    jax.block_until_ready(loss)

    ref = margin_loss_ref(y_pred, y_true, B_param)
    assert jnp.allclose(loss, ref, atol=1e-5, rtol=1e-5), (loss, ref)

    print("KERNEL_OK")
</pallas_src>

<mosaic_0001>
module attributes {stable_mosaic.version = 11 : i64} {
  func.func @_margin_loss_kernel(%arg0: i32, %arg1: memref<1x1xf32, #tpu.memory_space<smem>>, %arg2: memref<10x128xf32, #tpu.memory_space<vmem>>, %arg3: memref<1x128xi32, #tpu.memory_space<vmem>>, %arg4: memref<1x1xf32, #tpu.memory_space<smem>>, %arg5: memref<10x128xf32, #tpu.memory_space<vmem>>) attributes {dimension_semantics = [#tpu.dimension_semantics<arbitrary>], iteration_bounds = array<i64: 1>, scalar_prefetch = 0 : i64, scratch_operands = 1 : i64, tpu.core_type = #tpu.core_type<tc>, window_params = [{transform_indices = @transform_0, window_bounds = array<i64: 1, 1>}, {transform_indices = @transform_1, window_bounds = array<i64: 10, 128>}, {transform_indices = @transform_2, window_bounds = array<i64: 1, 128>}, {transform_indices = @transform_3, window_bounds = array<i64: 1, 1>}]} {
    %c0_i32 = arith.constant 0 : i32
    %0 = arith.cmpi eq, %arg0, %c0_i32 : i32
    %1 = arith.extui %0 : i1 to i32
    %c0_i32_0 = arith.constant 0 : i32
    %2 = arith.cmpi ne, %1, %c0_i32_0 : i32
    scf.if %2 {
      %cst_17 = arith.constant 0.000000e+00 : f32
      %38 = vector.broadcast %cst_17 : f32 to vector<10x128xf32>
      %c0_18 = arith.constant 0 : index
      %c0_19 = arith.constant 0 : index
      %39 = vector.load %arg5[%c0_18, %c0_19] : memref<10x128xf32, #tpu.memory_space<vmem>>, vector<10x128xf32>
      tpu.vector_store %arg5[%c0_18, %c0_19], %38 {strides = array<i32>} : memref<10x128xf32, #tpu.memory_space<vmem>>, vector<10x128xf32>,
    } else {
    }
    %c0 = arith.constant 0 : index
    %c0_1 = arith.constant 0 : index
    %3 = memref.load %arg1[%c0, %c0_1] : memref<1x1xf32, #tpu.memory_space<smem>>
    %cst = arith.constant 4.000000e-01 : f32
    %4 = arith.addf %3, %cst : f32
    %cst_2 = arith.constant 4.000000e-01 : f32
    %5 = arith.subf %3, %cst_2 : f32
    %c0_3 = arith.constant 0 : index
    %c0_4 = arith.constant 0 : index
    %6 = vector.load %arg2[%c0_3, %c0_4] : memref<10x128xf32, #tpu.memory_space<vmem>>, vector<10x128xf32>
    %c0_5 = arith.constant 0 : index
    %c0_6 = arith.constant 0 : index
    %7 = vector.load %arg3[%c0_5, %c0_6] : memref<1x128xi32, #tpu.memory_space<vmem>>, vector<1x128xi32>
    %8 = tpu.iota {dimensions = array<i32: 0>} : vector<10x128xi32>
    %9 = vector.broadcast %7 : vector<1x128xi32> to vector<10x128xi32>
    %10 = arith.cmpi eq, %8, %9 : vector<10x128xi32>
    %11 = tpu.iota {dimensions = array<i32: 1>} : vector<10x128xi32>
    %c128_i32 = arith.constant 128 : i32
    %12 = arith.muli %arg0, %c128_i32 : i32
    %13 = vector.broadcast %12 : i32 to vector<10x128xi32>
    %14 = arith.addi %11, %13 : vector<10x128xi32>
    %c8_i32 = arith.constant 8 : i32
    %15 = vector.broadcast %c8_i32 : i32 to vector<10x128xi32>
    %16 = arith.cmpi slt, %14, %15 : vector<10x128xi32>
    %17 = vector.broadcast %4 : f32 to vector<10x128xf32>
    %18 = arith.subf %17, %6 : vector<10x128xf32>
    %cst_7 = arith.constant 0.000000e+00 : f32
    %19 = vector.broadcast %cst_7 : f32 to vector<10x128xf32>
    %20 = arith.maximumf %18, %19 : vector<10x128xf32>
    %21 = vector.broadcast %5 : f32 to vector<10x128xf32>
    %22 = arith.subf %6, %21 : vector<10x128xf32>
    %cst_8 = arith.constant 0.000000e+00 : f32
    %23 = vector.broadcast %cst_8 : f32 to vector<10x128xf32>
    %24 = arith.maximumf %22, %23 : vector<10x128xf32>
    %25 = arith.mulf %20, %20 : vector<10x128xf32>
    %26 = arith.mulf %24, %24 : vector<10x128xf32>
    %cst_9 = arith.constant 5.000000e-01 : f32
    %27 = vector.broadcast %cst_9 : f32 to vector<10x128xf32>
    %28 = arith.mulf %27, %26 : vector<10x128xf32>
    %29 = arith.select %10, %25, %28 : vector<10x128xi1>, vector<10x128xf32>
    %cst_10 = arith.constant 0.000000e+00 : f32
    %30 = vector.broadcast %cst_10 : f32 to vector<10x128xf32>
    %31 = arith.select %16, %29, %30 : vector<10x128xi1>, vector<10x128xf32>
    %c0_11 = arith.constant 0 : index
    %c0_12 = arith.constant 0 : index
    %32 = vector.load %arg5[%c0_11, %c0_12] : memref<10x128xf32, #tpu.memory_space<vmem>>, vector<10x128xf32>
    %33 = arith.addf %32, %31 : vector<10x128xf32>
    %c0_13 = arith.constant 0 : index
    %c0_14 = arith.constant 0 : index
    %34 = vector.load %arg5[%c0_13, %c0_14] : memref<10x128xf32, #tpu.memory_space<vmem>>, vector<10x128xf32>
    tpu.vector_store %arg5[%c0_13, %c0_14], %33 {strides = array<i32>} : memref<10x128xf32, #tpu.memory_space<vmem>>, vector<10x128xf32>,
    %c0_i32_15 = arith.constant 0 : i32
    %35 = arith.cmpi eq, %arg0, %c0_i32_15 : i32
    %36 = arith.extui %35 : i1 to i32
    %c0_i32_16 = arith.constant 0 : i32
    %37 = arith.cmpi ne, %36, %c0_i32_16 : i32
    scf.if %37 {
      %c0_17 = arith.constant 0 : index
      %c0_18 = arith.constant 0 : index
      %38 = vector.load %arg5[%c0_17, %c0_18] : memref<10x128xf32, #tpu.memory_space<vmem>>, vector<10x128xf32>
      %39 = vector.shape_cast %38 : vector<10x128xf32> to vector<1x10x128xf32>
      %cst_19 = arith.constant dense<0.000000e+00> : vector<1xf32>
      %40 = vector.multi_reduction <add>, %39, %cst_19 [1, 2] : vector<1x10x128xf32> to vector<1xf32>
      %41 = vector.shape_cast %40 : vector<1xf32> to vector<1x1x1xf32>
      %42 = vector.extract %41[0, 0, 0] : f32 from vector<1x1x1xf32>
      %cst_20 = arith.constant 8.000000e+00 : f32
      %43 = arith.divf %42, %cst_20 : f32
      %c0_21 = arith.constant 0 : index
      %c0_22 = arith.constant 0 : index
      %44 = memref.load %arg4[%c0_21, %c0_22] : memref<1x1xf32, #tpu.memory_space<smem>>
      memref.store %43, %arg4[%c0_21, %c0_22] : memref<1x1xf32, #tpu.memory_space<smem>>
    } else {
    }
    return
  }
  func.func @transform_0(%arg0: i32) -> (i32, i32) {
    %c0_i32 = arith.constant 0 : i32
    %c0_i32_0 = arith.constant 0 : i32
    %c0_i32_1 = arith.constant 0 : i32
    return %c0_i32, %c0_i32_0 : i32, i32
  }
  func.func @transform_1(%arg0: i32) -> (i32, i32) {
    %c0_i32 = arith.constant 0 : i32
    %c0_i32_0 = arith.constant 0 : i32
    return %c0_i32, %arg0 : i32, i32
  }
  func.func @transform_2(%arg0: i32) -> (i32, i32) {
    %c0_i32 = arith.constant 0 : i32
    %c0_i32_0 = arith.constant 0 : i32
    return %c0_i32, %arg0 : i32, i32
  }
  func.func @transform_3(%arg0: i32) -> (i32, i32) {
    %c0_i32 = arith.constant 0 : i32
    %c0_i32_0 = arith.constant 0 : i32
    %c0_i32_1 = arith.constant 0 : i32
    return %c0_i32, %c0_i32_0 : i32, i32
  }
}

</mosaic_0001>

<llo_original>
// kernel: tpu_custom_call.1
$region0: #{tpu_custom_call.1}
  #allocation0 [shape = 'u32[]', space=smem, size = 0x4, offset = 0x4, fixed_abs, tag = 'smem constant byte address 0x4 - core index']
  #allocation1 [shape = 'u32[144,128]{1,0:T(1,128)}', space=vmem, size = 0x12000, scoped, tag = 'internal scratch']
  #allocation2 [shape = 'f32[10,128]{1,0:T(8,128)}', space=vmem, size = 0x2000, scoped, tag = 'scratch operand']
  #allocation3 [shape = 'f32[1,1]{1,0:T(1,128)S(6)}', space=smem, size = 0x200, scoped, tag = 'scoped memory for tpu_custom_call.1']
  %s0 = inlined_call_operand.<no memory space> [shape: f32[1,1], index: 0, kind: input, shape index: {}]
  %s1 = inlined_call_operand.hbm [shape: f32[10,128], index: 1, kind: input, shape index: {}]
  %s2 = inlined_call_operand.vmem [shape: s32[1,128], index: 2, kind: input, shape index: {}]
  %s3 = inlined_call_operand.hbm [shape: f32[1,1], index: 3, kind: output, shape index: {}]
  %s4 = sld [smem:[#allocation0]]
  $region34: #{tpu_custom_call.1} parent=0
    _
  %s6 = ssub.s32 1, %s4
  %s7 = scalar_select 0, %s6, %s4
  %8 = sst [smem:[#allocation3]] %s0
  $region1: #{tpu_custom_call.1} parent=0
    #allocation4 [shape = 'u8[8192]{0}', space=vmem, size = 0x2000, scoped, tag = 'input window, operand 1, single buffered']
    #allocation5 [shape = 's32[1]{0}', space=sflag, size = 0x4, scoped, tag = 'scoped memory for tpu_custom_call.1']
    #allocation6 [shape = 's32[1]{0}', space=sflag, size = 0x4, scoped, tag = 'scoped memory for tpu_custom_call.1']
    #allocation7 [shape = 'u8[512]{0}', space=smem, size = 0x200, scoped, tag = 'output window, operand 0, single buffered']
    %9 = vsyncpa [#allocation5], 0
    %10 = vsyncpa [#allocation6], 0
    // Predicated region
    $region2: #{tpu_custom_call.1} parent=1 // pred_check
      _
    $region3: #{tpu_custom_call.1} parent=1 // pred_check_branch
      %12 = sbr.rel (0) target = $region5
    $region4: #{tpu_custom_call.1} parent=1 // pred_region
      _
    $region5: #{tpu_custom_call.1} parent=1 // pred_fallthru
      _
    // Predicated region
    $region6: #{tpu_custom_call.1} parent=1 // pred_check
      _
    $region7: #{tpu_custom_call.1} parent=1 // pred_check_branch
      %14 = sbr.rel (0) target = $region9
    $region8: #{tpu_custom_call.1} parent=1 // pred_region
      %s16 = ssub.s32 256, 256
      %17 = vsyncadd [#allocation5], %s16
      %s18 = sshll.u32 [#allocation4], 4
      %s19 = int_to_ptr.vmem [resolvable:$true] %s18
      %24 = dma.hbm_to_vmem [thread:$0]  %s1, 256, %s19, [#allocation5], 128, 128, 8
    $region9: #{tpu_custom_call.1} parent=1 // pred_fallthru
      _
    // Predicated region
    $region10: #{tpu_custom_call.1} parent=1 // pred_check
      _
    $region11: #{tpu_custom_call.1} parent=1 // pred_check_branch
      %26 = sbr.rel (0) target = $region13
    $region12: #{tpu_custom_call.1} parent=1 // pred_region
      _
    $region13: #{tpu_custom_call.1} parent=1 // pred_fallthru
      _
    // Predicated region
    $region14: #{tpu_custom_call.1} parent=1 // pred_check
      _
    $region15: #{tpu_custom_call.1} parent=1 // pred_check_branch
      %28 = sbr.rel (0) target = $region17
    $region16: #{tpu_custom_call.1} parent=1 // pred_region
      %29 = dma.done [#allocation5], 256
    $region17: #{tpu_custom_call.1} parent=1 // pred_fallthru
      _
    %p30 = scmp.eq.s32.totalorder 0, 0
    // Predicated region
    $region18: #{tpu_custom_call.1} parent=1 // pred_check
      %p31 = pneg %p30
    $region19: #{tpu_custom_call.1} parent=1 // pred_check_branch
      %33 = sbr.rel (%p31) target = $region21
    $region20: #{tpu_custom_call.1} parent=1 // pred_region
      %34 = vst [vmem:[#allocation2] sm:$0xff] 0.0
      %35 = vst [vmem:[#allocation2 + $0x8] sm:$0x3] 0.0
    $region21: #{tpu_custom_call.1} parent=1 // pred_fallthru
      _
    %s36 = sld [smem:[#allocation3]]
    %s37 = sadd.f32 %s36, 0.4
    %s38 = ssub.f32 %s36, 0.4
    %v39 = vld [vmem:[#allocation4] sm:$0xff]
    %v40 = vld [vmem:[#allocation4 + $0x8] sm:$0x3]
    %v41 = vld [vmem:[%s2] sm:$0x1]
    %v42 = vlaneseq
    %v43 = vshrl.u32 %v42, 7
    %v44 = vadd.s32 %v43, 8
    %v45 = vlaneseq
    %v46 = vshrl.u32 %v45, 7
    %v47 = vsub.s32 0, %v46
    %v48 = vrot.slane %v41, %v47
    %vm49 = vcmp.eq.s32.totalorder %v43, %v48
    %vm50 = vcmp.eq.s32.totalorder %v44, %v48
    %v51 = vlaneseq
    %v52 = vand.u32 %v51, 127
    %s53 = smul.u32 0, 128
    %v54 = vstv %s53
    %v55 = vadd.s32 %v52, %v54
    %vm56 = vcmp.lt.s32.totalorder %v55, 8
    %v57 = vstv %s37
    %v58 = vsub.f32 %v57, %v39
    %v59 = vsub.f32 %v57, %v40
    %v60 = vmax.f32 %v58, 0.0
    %v61 = vmax.f32 %v59, 0.0
    %v62 = vstv %s38
    %v63 = vsub.f32 %v39, %v62
    %v64 = vsub.f32 %v40, %v62
    %v65 = vmax.f32 %v63, 0.0
    %v66 = vmax.f32 %v64, 0.0
    %v67 = vmul.f32 %v60, %v60
    %v68 = vmul.f32 %v61, %v61
    %v69 = vmul.f32 %v65, %v65
    %v70 = vmul.f32 %v66, %v66
    %v71 = vmul.f32 %v69, 0.5
    %v72 = vmul.f32 %v70, 0.5
    %v73 = vsel %vm49, %v67, %v71
    %v74 = vsel %vm50, %v68, %v72
    %v75 = vsel %vm56, %v73, 0.0
    %v76 = vsel %vm56, %v74, 0.0
    %v77 = vld [vmem:[#allocation2] sm:$0xff]
    %v78 = vld [vmem:[#allocation2 + $0x8] sm:$0x3]
    %v79 = vadd.f32 %v77, %v75
    %v80 = vadd.f32 %v78, %v76
    %81 = vst [vmem:[#allocation2] sm:$0xff] %v79
    %82 = vst [vmem:[#allocation2 + $0x8] sm:$0x3] %v80
    // Predicated region
    $region22: #{tpu_custom_call.1} parent=1 // pred_check
      %p83 = pneg %p30
    $region23: #{tpu_custom_call.1} parent=1 // pred_check_branch
      %85 = sbr.rel (%p83) target = $region25
    $region24: #{tpu_custom_call.1} parent=1 // pred_region
      %v86 = vld [vmem:[#allocation2] sm:$0xff]
      %v87 = vld [vmem:[#allocation2 + $0x8] sm:$0x3]
      %vm88 = vcmask 1041408
      %v89 = vsel %vm88, %v87, 0.0
      %v90 = vadd.f32 %v86, %v89
      %91 = vadd.xlane.f32.xlu0 %v90
      %v92 = vpop.xlane.xlu0 %91
      %v93 = vrot.slane %v92, 4
      %v94 = vadd.f32 %v92, %v93
      %v95 = vrot.slane %v94, 2
      %v96 = vadd.f32 %v94, %v95
      %v97 = vrot.slane %v96, 1
      %v98 = vadd.f32 %v96, %v97
      %s99 = vtos %v98
      %v100 = vrcp.pop 8.0
      %s101 = vtos %v100
      %s102 = smul.f32 %s99, %s101
      %s103 = scalar_lea.smem [#allocation7], 0
      %104 = sst [smem:[%s103]] %s102
    $region25: #{tpu_custom_call.1} parent=1 // pred_fallthru
      _
    // Predicated region
    $region26: #{tpu_custom_call.1} parent=1 // pred_check
      _
    $region27: #{tpu_custom_call.1} parent=1 // pred_check_branch
      %106 = sbr.rel (0) target = $region29
    $region28: #{tpu_custom_call.1} parent=1 // pred_region
      %s108 = ssub.s32 16, 16
      %109 = vsyncadd [#allocation6], %s108
      %112 = dma.smem_to_hbm [#allocation7], 16, %s3, [#allocation6]
    $region29: #{tpu_custom_call.1} parent=1 // pred_fallthru
      _
    // Predicated region
    $region30: #{tpu_custom_call.1} parent=1 // pred_check
      _
    $region31: #{tpu_custom_call.1} parent=1 // pred_check_branch
      %114 = sbr.rel (0) target = $region33
    $region32: #{tpu_custom_call.1} parent=1 // pred_region
      %115 = dma.done [#allocation6], 16
    $region33: #{tpu_custom_call.1} parent=1 // pred_fallthru
      _
    %116 = sfence
    %117 = vsyncpa [#allocation5], 1
    %118 = vsyncpa [#allocation6], 1

</llo_original>
